<compile_context>
chip_gen: v7x
topology: tpu7x:2x2x1
jax: 0.10.0
libtpu: 0.0.40
codegen_flags: <defaults>
</compile_context>

<pallas_src>
import jax
import jax.numpy as jnp
from jax.experimental import pallas as pl
from jax.experimental.pallas import tpu as pltpu


def attention_kernel(enc_ref, dec_ref, we_sum_ref, wd_sum_ref, b_sum_ref, out_ref):
    # enc_ref    : (S, B, 2E)  encoder outputs (whole array, VMEM)
    # dec_ref    : (B, D)      decoder hidden
    # we_sum_ref : (1, 1, 2E)  column-sum of the encoder half of the Linear weight
    # wd_sum_ref : (1, D)      column-sum of the decoder half of the Linear weight
    # b_sum_ref  : (1, 1)      sum of the Linear bias
    # out_ref    : (S, B, 1)   softmax over S (wrapper squeezes to (S, B))

    # attention[s, b] = sum_d energy[s, b, d]
    #                 = enc[s,b,:] . colsum(We) + dec[b,:] . colsum(Wd) + sum(bias)
    enc_logit = jnp.sum(enc_ref[...] * we_sum_ref[...], axis=2, keepdims=True)   # (S, B, 1)
    dec_logit = (jnp.sum(dec_ref[...] * wd_sum_ref[...], axis=1, keepdims=True)
                 + b_sum_ref[...])                                                # (B, 1)
    logits = enc_logit + dec_logit[None]                                          # (S, B, 1)

    # Softmax over src_len (axis 0).  The dec/bias term is constant along S and
    # cancels mathematically, but we keep it so the logits match PyTorch's.
    m = jnp.max(logits, axis=0, keepdims=True)                                    # (1, B, 1)
    e = jnp.exp(logits - m)
    out_ref[...] = e / jnp.sum(e, axis=0, keepdims=True)


def attention_forward(encoder_outputs, decoder_hidden, W, b):
    """Forward of Attention.  W: (2E + D, D) == torch `attn.weight.T`; b: (D,)."""
    S, B, E2 = encoder_outputs.shape
    Bd, D = decoder_hidden.shape
    assert Bd == B and W.shape == (E2 + D, D) and b.shape == (D,)

    f32 = jnp.float32
    # One-time, input-independent weight preprocessing (column sums of the
    # concatenated Linear weight, split into encoder / decoder halves).
    we_sum = jnp.sum(W[:E2], axis=1).reshape(1, 1, E2).astype(f32)   # (1, 1, 2E)
    wd_sum = jnp.sum(W[E2:], axis=1).reshape(1, D).astype(f32)       # (1, D)
    b_sum = jnp.sum(b).reshape(1, 1).astype(f32)                     # (1, 1)

    out3 = pl.pallas_call(
        attention_kernel,
        out_shape=jax.ShapeDtypeStruct((S, B, 1), f32),
        in_specs=[pl.BlockSpec(memory_space=pltpu.MemorySpace.VMEM) for _ in range(5)],
        out_specs=pl.BlockSpec(memory_space=pltpu.MemorySpace.VMEM),
        # NOTE: at these shapes everything fits in VMEM in one shot; for large
        # S*B one would add an S-chunk grid axis (and a "parallel" B axis for
        # v7x's two TensorCores) instead of a single invocation.
    )(encoder_outputs.astype(f32), decoder_hidden.astype(f32), we_sum, wd_sum, b_sum)

    return out3.reshape(S, B)   # trailing-unit-dim squeeze (free), matches PyTorch (S, B)


def attention_ref(encoder_outputs, decoder_hidden, W, b):
    """Straightforward JAX translation of the PyTorch module (high-precision matmul)."""
    S = encoder_outputs.shape[0]
    dec_rep = jnp.broadcast_to(decoder_hidden[None], (S,) + decoder_hidden.shape)
    x = jnp.concatenate([encoder_outputs, dec_rep], axis=2)
    energy = jnp.einsum("sbi,ij->sbj", x, W, precision=jax.lax.Precision.HIGHEST) + b
    attention = jnp.sum(energy, axis=2)
    return jax.nn.softmax(attention, axis=0)


if __name__ == "__main__":
    # Module defaults (enc_hid_dim=128, dec_hid_dim=256) with a small seq/batch.
    S, B = 8, 4
    enc_hid, dec_hid = 128, 256
    in_dim = 2 * enc_hid + dec_hid

    key = jax.random.PRNGKey(0)
    k1, k2, k3, k4 = jax.random.split(key, 4)
    encoder_outputs = jax.random.normal(k1, (S, B, 2 * enc_hid), jnp.float32)
    decoder_hidden = jax.random.normal(k2, (B, dec_hid), jnp.float32)

    # Deterministic Linear(2E+D, D) params (uniform, like torch's default init).
    bound = 1.0 / (in_dim ** 0.5)
    W = jax.random.uniform(k3, (in_dim, dec_hid), jnp.float32, -bound, bound)
    b = jax.random.uniform(k4, (dec_hid,), jnp.float32, -bound, bound)

    out = attention_forward(encoder_outputs, decoder_hidden, W, b)
    out = jax.block_until_ready(out)

    ref = attention_ref(encoder_outputs, decoder_hidden, W, b)
    assert out.shape == (S, B)
    assert bool(jnp.allclose(out, ref, atol=1e-5, rtol=1e-4))
    print("KERNEL_OK")
</pallas_src>

<mosaic_0001>
module attributes {stable_mosaic.version = 11 : i64} {
  func.func @attention_kernel(%arg0: memref<8x4x256xf32, #tpu.memory_space<vmem>>, %arg1: memref<4x256xf32, #tpu.memory_space<vmem>>, %arg2: memref<1x1x256xf32, #tpu.memory_space<vmem>>, %arg3: memref<1x256xf32, #tpu.memory_space<vmem>>, %arg4: memref<1x1xf32, #tpu.memory_space<vmem>>, %arg5: memref<8x4x1xf32, #tpu.memory_space<vmem>>) attributes {dimension_semantics = [], scalar_prefetch = 0 : i64, scratch_operands = 0 : i64, tpu.core_type = #tpu.core_type<tc>} {
    %c0 = arith.constant 0 : index
    %c0_0 = arith.constant 0 : index
    %c0_1 = arith.constant 0 : index
    %0 = vector.load %arg0[%c0, %c0_0, %c0_1] : memref<8x4x256xf32, #tpu.memory_space<vmem>>, vector<8x4x256xf32>
    %c0_2 = arith.constant 0 : index
    %c0_3 = arith.constant 0 : index
    %c0_4 = arith.constant 0 : index
    %1 = vector.load %arg2[%c0_2, %c0_3, %c0_4] : memref<1x1x256xf32, #tpu.memory_space<vmem>>, vector<1x1x256xf32>
    %2 = vector.broadcast %1 : vector<1x1x256xf32> to vector<8x4x256xf32>
    %3 = arith.mulf %0, %2 : vector<8x4x256xf32>
    %cst = arith.constant dense<0.000000e+00> : vector<8x4xf32>
    %4 = vector.multi_reduction <add>, %3, %cst [2] : vector<8x4x256xf32> to vector<8x4xf32>
    %5 = vector.shape_cast %4 : vector<8x4xf32> to vector<8x4x1xf32>
    %c0_5 = arith.constant 0 : index
    %c0_6 = arith.constant 0 : index
    %6 = vector.load %arg1[%c0_5, %c0_6] : memref<4x256xf32, #tpu.memory_space<vmem>>, vector<4x256xf32>
    %c0_7 = arith.constant 0 : index
    %c0_8 = arith.constant 0 : index
    %7 = vector.load %arg3[%c0_7, %c0_8] : memref<1x256xf32, #tpu.memory_space<vmem>>, vector<1x256xf32>
    %8 = vector.broadcast %7 : vector<1x256xf32> to vector<4x256xf32>
    %9 = arith.mulf %6, %8 : vector<4x256xf32>
    %cst_9 = arith.constant dense<0.000000e+00> : vector<4xf32>
    %10 = vector.multi_reduction <add>, %9, %cst_9 [1] : vector<4x256xf32> to vector<4xf32>
    %11 = vector.shape_cast %10 : vector<4xf32> to vector<4x1xf32>
    %c0_10 = arith.constant 0 : index
    %c0_11 = arith.constant 0 : index
    %12 = vector.load %arg4[%c0_10, %c0_11] : memref<1x1xf32, #tpu.memory_space<vmem>>, vector<1x1xf32>
    %13 = vector.broadcast %12 : vector<1x1xf32> to vector<4x1xf32>
    %14 = arith.addf %11, %13 : vector<4x1xf32>
    %15 = vector.shape_cast %14 : vector<4x1xf32> to vector<1x4x1xf32>
    %16 = vector.broadcast %15 : vector<1x4x1xf32> to vector<8x4x1xf32>
    %17 = arith.addf %5, %16 : vector<8x4x1xf32>
    %cst_12 = arith.constant dense<0xFF800000> : vector<4x1xf32>
    %18 = vector.multi_reduction <maximumf>, %17, %cst_12 [0] : vector<8x4x1xf32> to vector<4x1xf32>
    %19 = vector.shape_cast %18 : vector<4x1xf32> to vector<1x4x1xf32>
    %20 = vector.broadcast %19 : vector<1x4x1xf32> to vector<8x4x1xf32>
    %21 = arith.subf %17, %20 : vector<8x4x1xf32>
    %22 = math.exp %21 : vector<8x4x1xf32>
    %cst_13 = arith.constant dense<0.000000e+00> : vector<4x1xf32>
    %23 = vector.multi_reduction <add>, %22, %cst_13 [0] : vector<8x4x1xf32> to vector<4x1xf32>
    %24 = vector.shape_cast %23 : vector<4x1xf32> to vector<1x4x1xf32>
    %25 = vector.broadcast %24 : vector<1x4x1xf32> to vector<8x4x1xf32>
    %26 = arith.divf %22, %25 : vector<8x4x1xf32>
    %c0_14 = arith.constant 0 : index
    %c0_15 = arith.constant 0 : index
    %c0_16 = arith.constant 0 : index
    %27 = vector.load %arg5[%c0_14, %c0_15, %c0_16] : memref<8x4x1xf32, #tpu.memory_space<vmem>>, vector<8x4x1xf32>
    tpu.vector_store %arg5[%c0_14, %c0_15, %c0_16], %26 {strides = array<i32>} : memref<8x4x1xf32, #tpu.memory_space<vmem>>, vector<8x4x1xf32>,
    return
  }
}

</mosaic_0001>

<llo_original>
// kernel: tpu_custom_call.1
$region0: #{tpu_custom_call.1}
  #allocation0 [shape = 'u32[]', space=smem, size = 0x4, offset = 0x4, fixed_abs, tag = 'smem constant byte address 0x4 - core index']
  #allocation1 [shape = 'u32[144,128]{1,0:T(1,128)}', space=vmem, size = 0x12000, scoped, tag = 'internal scratch']
  #allocation2 [shape = 'f32[1,1]{1,0:T(1,128)S(1)}', space=vmem, size = 0x200, scoped, tag = 'scoped memory for tpu_custom_call.1']
  %s0 = inlined_call_operand.hbm [shape: f32[8,4,256], index: 0, kind: input, shape index: {}]
  %s1 = inlined_call_operand.hbm [shape: f32[4,256], index: 1, kind: input, shape index: {}]
  %s2 = inlined_call_operand.vmem [shape: f32[1,1,256], index: 2, kind: input, shape index: {}]
  %s3 = inlined_call_operand.vmem [shape: f32[1,256], index: 3, kind: input, shape index: {}]
  %s4 = inlined_call_operand.<no memory space> [shape: f32[1,1], index: 4, kind: input, shape index: {}]
  %s5 = inlined_call_operand.vmem [shape: f32[8,4,1], index: 5, kind: output, shape index: {}]
  %s6 = sld [smem:[#allocation0]]
  $region38: #{tpu_custom_call.1} parent=0
    _
  %s8 = ssub.s32 1, %s6
  %s9 = scalar_select 0, %s8, %s6
  %v10 = vstv %s4
  %11 = vst [vmem:[#allocation2] sm:$0x1] %v10
  $region1: #{tpu_custom_call.1} parent=0
    #allocation3 [shape = 'u8[32768]{0}', space=vmem, size = 0x8000, scoped, tag = 'input window, operand 0, single buffered']
    #allocation4 [shape = 's32[1]{0}', space=sflag, size = 0x4, scoped, tag = 'scoped memory for tpu_custom_call.1']
    #allocation5 [shape = 'u8[4096]{0}', space=vmem, size = 0x1000, scoped, tag = 'input window, operand 1, single buffered']
    #allocation6 [shape = 's32[1]{0}', space=sflag, size = 0x4, scoped, tag = 'scoped memory for tpu_custom_call.1']
    %12 = vsyncpa [#allocation4], 0
    %13 = vsyncpa [#allocation6], 0
    // Predicated region
    $region2: #{tpu_custom_call.1} parent=1 // pred_check
      _
    $region3: #{tpu_custom_call.1} parent=1 // pred_check_branch
      %15 = sbr.rel (0) target = $region5
    $region4: #{tpu_custom_call.1} parent=1 // pred_region
      %s17 = ssub.s32 1024, 1024
      %18 = vsyncadd [#allocation4], %s17
      %s19 = sshll.u32 [#allocation3], 4
      %s20 = int_to_ptr.vmem [resolvable:$true] %s19
      %25 = dma.hbm_to_vmem [thread:$0]  %s0, 1024, %s20, [#allocation4], 128, 128, 8
    $region5: #{tpu_custom_call.1} parent=1 // pred_fallthru
      _
    // Predicated region
    $region6: #{tpu_custom_call.1} parent=1 // pred_check
      _
    $region7: #{tpu_custom_call.1} parent=1 // pred_check_branch
      %27 = sbr.rel (0) target = $region9
    $region8: #{tpu_custom_call.1} parent=1 // pred_region
      %s29 = ssub.s32 128, 128
      %30 = vsyncadd [#allocation6], %s29
      %s32 = sshll.u32 [#allocation5], 4
      %s33 = int_to_ptr.vmem [resolvable:$true] %s32
      %35 = dma.hbm_to_vmem [thread:$0]  %s1, 128, %s33, [#allocation6]
    $region9: #{tpu_custom_call.1} parent=1 // pred_fallthru
      _
    // Predicated region
    $region10: #{tpu_custom_call.1} parent=1 // pred_check
      _
    $region11: #{tpu_custom_call.1} parent=1 // pred_check_branch
      %37 = sbr.rel (0) target = $region13
    $region12: #{tpu_custom_call.1} parent=1 // pred_region
      _
    $region13: #{tpu_custom_call.1} parent=1 // pred_fallthru
      _
    // Predicated region
    $region14: #{tpu_custom_call.1} parent=1 // pred_check
      _
    $region15: #{tpu_custom_call.1} parent=1 // pred_check_branch
      %39 = sbr.rel (0) target = $region17
    $region16: #{tpu_custom_call.1} parent=1 // pred_region
      _
    $region17: #{tpu_custom_call.1} parent=1 // pred_fallthru
      _
    // Predicated region
    $region18: #{tpu_custom_call.1} parent=1 // pred_check
      _
    $region19: #{tpu_custom_call.1} parent=1 // pred_check_branch
      %41 = sbr.rel (0) target = $region21
    $region20: #{tpu_custom_call.1} parent=1 // pred_region
      _
    $region21: #{tpu_custom_call.1} parent=1 // pred_fallthru
      _
    // Predicated region
    $region22: #{tpu_custom_call.1} parent=1 // pred_check
      _
    $region23: #{tpu_custom_call.1} parent=1 // pred_check_branch
      %43 = sbr.rel (0) target = $region25
    $region24: #{tpu_custom_call.1} parent=1 // pred_region
      %44 = dma.done [#allocation4], 1024
    $region25: #{tpu_custom_call.1} parent=1 // pred_fallthru
      _
    // Predicated region
    $region26: #{tpu_custom_call.1} parent=1 // pred_check
      _
    $region27: #{tpu_custom_call.1} parent=1 // pred_check_branch
      %46 = sbr.rel (0) target = $region29
    $region28: #{tpu_custom_call.1} parent=1 // pred_region
      %47 = dma.done [#allocation6], 128
    $region29: #{tpu_custom_call.1} parent=1 // pred_fallthru
      _
    %v48 = vld [vmem:[#allocation3] sm:$0xff]
    %v49 = vld [vmem:[#allocation3 + $0x8] sm:$0xff]
    %v50 = vld [vmem:[#allocation3 + $0x10] sm:$0xff]
    %v51 = vld [vmem:[#allocation3 + $0x18] sm:$0xff]
    %v52 = vld [vmem:[#allocation3 + $0x20] sm:$0xff]
    %v53 = vld [vmem:[#allocation3 + $0x28] sm:$0xff]
    %v54 = vld [vmem:[#allocation3 + $0x30] sm:$0xff]
    %v55 = vld [vmem:[#allocation3 + $0x38] sm:$0xff]
    %v56 = vld [vmem:[%s2] sm:$0x3]
    %v58 = vlaneseq
    %v59 = vshrl.u32 %v58, 7
    %v60 = vsub.s32 0, %v59
    %v61 = vrot.slane %v56, %v60
    %v62 = vlaneseq
    %v63 = vshrl.u32 %v62, 7
    %v64 = vsub.s32 1, %v63
    %v65 = vrot.slane %v56, %v64
    %v66 = vcombine.low %v61, %v65
    %v68 = vmul.f32 %v48, %v66
    %v69 = vmul.f32 %v49, %v66
    %v70 = vmul.f32 %v50, %v66
    %v71 = vmul.f32 %v51, %v66
    %v72 = vmul.f32 %v52, %v66
    %v73 = vmul.f32 %v53, %v66
    %v74 = vmul.f32 %v54, %v66
    %v75 = vmul.f32 %v55, %v66
    %v84 = vcombine.high %v68, %v68
    %v85 = vcombine.high %v69, %v69
    %v86 = vcombine.high %v70, %v70
    %v87 = vcombine.high %v71, %v71
    %v88 = vcombine.high %v72, %v72
    %v89 = vcombine.high %v73, %v73
    %v90 = vcombine.high %v74, %v74
    %v91 = vcombine.high %v75, %v75
    %vm100 = vcmask 1043456
    %v101 = vsel %vm100, %v68, 0.0
    %v102 = vsel %vm100, %v84, 0.0
    %v103 = vadd.f32 %v101, %v102
    %104 = vadd.xlane.f32.xlu0 %v103
    %v105 = vpop.xlane.xlu0 %104
    %v106 = vsel %vm100, %v69, 0.0
    %v107 = vsel %vm100, %v85, 0.0
    %v108 = vadd.f32 %v106, %v107
    %109 = vadd.xlane.f32.xlu0 %v108
    %v110 = vpop.xlane.xlu0 %109
    %v111 = vsel %vm100, %v70, 0.0
    %v112 = vsel %vm100, %v86, 0.0
    %v113 = vadd.f32 %v111, %v112
    %114 = vadd.xlane.f32.xlu0 %v113
    %v115 = vpop.xlane.xlu0 %114
    %v116 = vsel %vm100, %v71, 0.0
    %v117 = vsel %vm100, %v87, 0.0
    %v118 = vadd.f32 %v116, %v117
    %119 = vadd.xlane.f32.xlu0 %v118
    %v120 = vpop.xlane.xlu0 %119
    %v121 = vsel %vm100, %v72, 0.0
    %v122 = vsel %vm100, %v88, 0.0
    %v123 = vadd.f32 %v121, %v122
    %124 = vadd.xlane.f32.xlu0 %v123
    %v125 = vpop.xlane.xlu0 %124
    %v126 = vsel %vm100, %v73, 0.0
    %v127 = vsel %vm100, %v89, 0.0
    %v128 = vadd.f32 %v126, %v127
    %129 = vadd.xlane.f32.xlu0 %v128
    %v130 = vpop.xlane.xlu0 %129
    %v131 = vsel %vm100, %v74, 0.0
    %v132 = vsel %vm100, %v90, 0.0
    %v133 = vadd.f32 %v131, %v132
    %134 = vadd.xlane.f32.xlu0 %v133
    %v135 = vpop.xlane.xlu0 %134
    %v136 = vsel %vm100, %v75, 0.0
    %v137 = vsel %vm100, %v91, 0.0
    %v138 = vadd.f32 %v136, %v137
    %139 = vadd.xlane.f32.xlu0 %v138
    %v140 = vpop.xlane.xlu0 %139
    %v141 = vld [vmem:[#allocation5] sm:$0xff]
    %v142 = vld [vmem:[%s3] sm:$0x3]
    %v144 = vlaneseq
    %v145 = vshrl.u32 %v144, 7
    %v146 = vsub.s32 0, %v145
    %v147 = vrot.slane %v142, %v146
    %v148 = vlaneseq
    %v149 = vshrl.u32 %v148, 7
    %v150 = vsub.s32 1, %v149
    %v151 = vrot.slane %v142, %v150
    %v152 = vcombine.low %v147, %v151
    %v154 = vmul.f32 %v141, %v152
    %v156 = vcombine.high %v154, %v154
    %v158 = vsel %vm100, %v154, 0.0
    %v159 = vsel %vm100, %v156, 0.0
    %v160 = vadd.f32 %v158, %v159
    %161 = vadd.xlane.f32.xlu0 %v160
    %v162 = vpop.xlane.xlu0 %161
    %v163 = vld [vmem:[#allocation2] sm:$0x1]
    %v165 = vlaneseq
    %v166 = vshrl.u32 %v165, 7
    %v167 = vsub.s32 0, %v166
    %v168 = vrot.slane %v163, %v167
    %v170 = vadd.f32 %v162, %v168
    %v171 = vadd.f32 %v105, %v170
    %v172 = vadd.f32 %v110, %v170
    %v173 = vadd.f32 %v115, %v170
    %v174 = vadd.f32 %v120, %v170
    %v175 = vadd.f32 %v125, %v170
    %v176 = vadd.f32 %v130, %v170
    %v177 = vadd.f32 %v135, %v170
    %v178 = vadd.f32 %v140, %v170
    %vm179 = vcmask 3072
    %v180 = vsel %vm179, %v171, -inf
    %v181 = vsel %vm179, %v172, -inf
    %v182 = vsel %vm179, %v173, -inf
    %v183 = vsel %vm179, %v174, -inf
    %v184 = vsel %vm179, %v175, -inf
    %v185 = vmax.f32 %v180, %v184
    %v186 = vsel %vm179, %v176, -inf
    %v187 = vmax.f32 %v181, %v186
    %v188 = vsel %vm179, %v177, -inf
    %v189 = vmax.f32 %v182, %v188
    %v190 = vsel %vm179, %v178, -inf
    %v191 = vmax.f32 %v183, %v190
    %v192 = vmax.f32 %v185, %v187
    %v193 = vmax.f32 %v189, %v191
    %v194 = vmax.f32 %v192, %v193
    %v195 = vsub.f32 %v171, %v194
    %v196 = vsub.f32 %v172, %v194
    %v197 = vsub.f32 %v173, %v194
    %v198 = vsub.f32 %v174, %v194
    %v199 = vsub.f32 %v175, %v194
    %v200 = vsub.f32 %v176, %v194
    %v201 = vsub.f32 %v177, %v194
    %v202 = vsub.f32 %v178, %v194
    %v203 = vmul.f32 %v195, 1.442695
    %v204 = vpow.pop %v203
    %v205 = vmul.f32 %v196, 1.442695
    %v206 = vpow.pop %v205
    %v207 = vmul.f32 %v197, 1.442695
    %v208 = vpow.pop %v207
    %v209 = vmul.f32 %v198, 1.442695
    %v210 = vpow.pop %v209
    %v211 = vmul.f32 %v199, 1.442695
    %v212 = vpow.pop %v211
    %v213 = vmul.f32 %v200, 1.442695
    %v214 = vpow.pop %v213
    %v215 = vmul.f32 %v201, 1.442695
    %v216 = vpow.pop %v215
    %v217 = vmul.f32 %v202, 1.442695
    %v218 = vpow.pop %v217
    %v219 = vsel %vm179, %v204, 0.0
    %v220 = vsel %vm179, %v206, 0.0
    %v221 = vadd.f32 %v219, %v220
    %v222 = vsel %vm179, %v208, 0.0
    %v223 = vadd.f32 %v221, %v222
    %v224 = vsel %vm179, %v210, 0.0
    %v225 = vadd.f32 %v223, %v224
    %v226 = vsel %vm179, %v212, 0.0
    %v227 = vadd.f32 %v225, %v226
    %v228 = vsel %vm179, %v214, 0.0
    %v229 = vadd.f32 %v227, %v228
    %v230 = vsel %vm179, %v216, 0.0
    %v231 = vadd.f32 %v229, %v230
    %v232 = vsel %vm179, %v218, 0.0
    %v233 = vadd.f32 %v231, %v232
    %v234 = vrcp.pop %v233
    %v235 = vmul.f32 %v204, %v234
    %v236 = vmul.f32 %v206, %v234
    %v237 = vmul.f32 %v208, %v234
    %v238 = vmul.f32 %v210, %v234
    %v239 = vmul.f32 %v212, %v234
    %v240 = vmul.f32 %v214, %v234
    %v241 = vmul.f32 %v216, %v234
    %v242 = vmul.f32 %v218, %v234
    %243 = vst.msk [vmem:[%s5] sm:$0xf] %vm179, %v235
    %244 = vst.msk [vmem:[%s5 + $0x4] sm:$0xf] %vm179, %v236
    %245 = vst.msk [vmem:[%s5 + $0x8] sm:$0xf] %vm179, %v237
    %246 = vst.msk [vmem:[%s5 + $0xc] sm:$0xf] %vm179, %v238
    %247 = vst.msk [vmem:[%s5 + $0x10] sm:$0xf] %vm179, %v239
    %248 = vst.msk [vmem:[%s5 + $0x14] sm:$0xf] %vm179, %v240
    %249 = vst.msk [vmem:[%s5 + $0x18] sm:$0xf] %vm179, %v241
    %250 = vst.msk [vmem:[%s5 + $0x1c] sm:$0xf] %vm179, %v242
    // Predicated region
    $region30: #{tpu_custom_call.1} parent=1 // pred_check
      _
    $region31: #{tpu_custom_call.1} parent=1 // pred_check_branch
      %252 = sbr.rel (0) target = $region33
    $region32: #{tpu_custom_call.1} parent=1 // pred_region
      _
    $region33: #{tpu_custom_call.1} parent=1 // pred_fallthru
      _
    // Predicated region
    $region34: #{tpu_custom_call.1} parent=1 // pred_check
      _
    $region35: #{tpu_custom_call.1} parent=1 // pred_check_branch
      %254 = sbr.rel (0) target = $region37
    $region36: #{tpu_custom_call.1} parent=1 // pred_region
      _
    $region37: #{tpu_custom_call.1} parent=1 // pred_fallthru
      _
    %255 = vsyncpa [#allocation4], 1
    %256 = vsyncpa [#allocation6], 1

</llo_original>
